<compile_context>
chip_gen: v6e
topology: v6e:2x2x1
jax: 0.10.0
libtpu: 0.0.40
codegen_flags: <defaults>
</compile_context>

<pallas_src>
import functools

import jax
import jax.numpy as jnp
from jax import lax
from jax.experimental import pallas as pl
from jax.experimental.pallas import tpu as pltpu


def _round_up(x, m):
    return (x + m - 1) // m * m


# -----------------------------------------------------------------------------
# Fused conv-as-GEMM kernel:  out = act((patches @ W + bias) * scale + shift)
# -----------------------------------------------------------------------------
def _conv_gemm_kernel(p_ref, w_ref, b_ref, s_ref, t_ref, o_ref, *, relu: bool):
    acc = jnp.dot(p_ref[...], w_ref[...], preferred_element_type=jnp.float32)
    y = (acc + b_ref[...]) * s_ref[...] + t_ref[...]
    if relu:
        y = jnp.maximum(y, 0.0)
    o_ref[...] = y.astype(o_ref.dtype)


def _fused_conv_gemm(patches, w_mat, bias, scale, shift, *, relu):
    """patches: (M, K), w_mat: (K, N), bias/scale/shift: (N,) -> (M, N) f32."""
    M, K = patches.shape
    _, N = w_mat.shape

    # Tile only the M axis; pad M up so the tile divides it exactly.
    tm = min(256, _round_up(M, 8))
    m_pad = _round_up(M, tm)
    if m_pad != M:
        patches = jnp.pad(patches, ((0, m_pad - M), (0, 0)))

    bias = bias.reshape(1, N).astype(jnp.float32)
    scale = scale.reshape(1, N).astype(jnp.float32)
    shift = shift.reshape(1, N).astype(jnp.float32)

    out = pl.pallas_call(
        functools.partial(_conv_gemm_kernel, relu=relu),
        out_shape=jax.ShapeDtypeStruct((m_pad, N), jnp.float32),
        grid=(m_pad // tm,),
        in_specs=[
            pl.BlockSpec((tm, K), lambda i: (i, 0)),   # patch rows (tiled)
            pl.BlockSpec((K, N), lambda i: (0, 0)),    # weights (resident)
            pl.BlockSpec((1, N), lambda i: (0, 0)),    # conv bias
            pl.BlockSpec((1, N), lambda i: (0, 0)),    # BN scale
            pl.BlockSpec((1, N), lambda i: (0, 0)),    # BN shift
        ],
        out_specs=pl.BlockSpec((tm, N), lambda i: (i, 0)),
        compiler_params=pltpu.CompilerParams(
            dimension_semantics=("parallel",)),
    )(patches, w_mat, bias, scale, shift)
    return out[:M]


# -----------------------------------------------------------------------------
# Head kernel: out_z = x[:, :100],  out_rf = sigmoid(x[:, -1])
# -----------------------------------------------------------------------------
def _head_kernel(x_ref, z_ref, rf_ref):
    x = x_ref[...]
    nz = z_ref.shape[1]
    z_ref[...] = x[:, :nz]
    last = x[:, x.shape[1] - 1:]
    rf_ref[...] = 1.0 / (1.0 + jnp.exp(-last))


def _head(x_flat, n_z=100):
    B, F = x_flat.shape
    out_z, out_rf = pl.pallas_call(
        _head_kernel,
        out_shape=(jax.ShapeDtypeStruct((B, n_z), jnp.float32),
                   jax.ShapeDtypeStruct((B, 1), jnp.float32)),
        in_specs=[pl.BlockSpec((B, F), lambda: (0, 0))],
        out_specs=(pl.BlockSpec((B, n_z), lambda: (0, 0)),
                   pl.BlockSpec((B, 1), lambda: (0, 0))),
    )(x_flat)
    return out_z, out_rf[:, 0]


# -----------------------------------------------------------------------------
# Wrapper-side layout plumbing (padding / im2col / reshapes).
# -----------------------------------------------------------------------------
def _im2col(x_nhwc, k, stride, pad):
    B, H, W, C = x_nhwc.shape
    ho = (H + 2 * pad - k) // stride + 1
    wo = (W + 2 * pad - k) // stride + 1
    xp = jnp.pad(x_nhwc, ((0, 0), (pad, pad), (pad, pad), (0, 0)))
    cols = []
    for kh in range(k):
        for kw in range(k):
            sl = lax.slice(
                xp,
                (0, kh, kw, 0),
                (B, kh + (ho - 1) * stride + 1, kw + (wo - 1) * stride + 1, C),
                (1, stride, stride, 1),
            )
            cols.append(sl)                           # (B, ho, wo, C)
    patches = jnp.concatenate(cols, axis=-1)          # (B, ho, wo, k*k*C)
    return patches.reshape(B * ho * wo, k * k * C), ho, wo


def _conv_bn_relu(x_nhwc, w_hwio, bias, scale, shift, *, stride=2, pad=1, relu=True):
    k, _, cin, cout = w_hwio.shape
    patches, ho, wo = _im2col(x_nhwc, k, stride, pad)
    w_mat = w_hwio.reshape(k * k * cin, cout)
    out = _fused_conv_gemm(patches, w_mat, bias, scale, shift, relu=relu)
    B = x_nhwc.shape[0]
    return out.reshape(B, ho, wo, cout)


def discriminator_forward(x_nchw, params):
    """Pallas implementation of Discriminator.forward (NCHW input, like PyTorch)."""
    x = jnp.transpose(x_nchw, (0, 2, 3, 1)).astype(jnp.float32)   # -> NHWC
    for layer in params["convs"]:
        x = _conv_bn_relu(x, layer["w"], layer["b"], layer["scale"],
                          layer["shift"], relu=layer["relu"])
    # PyTorch flattens the NCHW tensor -> (B, C*H*W).
    B, H, W, C = x.shape
    x_flat = jnp.transpose(x, (0, 3, 1, 2)).reshape(B, C * H * W)
    return _head(x_flat, n_z=100)


# -----------------------------------------------------------------------------
# Deterministic parameters (conv weights HWIO, BN folded to scale/shift).
# -----------------------------------------------------------------------------
def init_params(key, ic=3, eps=1e-5):
    dims = [(ic, 32), (32, 64), (64, 128), (128, 101)]
    convs = []
    for li, (cin, cout) in enumerate(dims):
        key, kw, kb, kg, kbe, km, kv = jax.random.split(key, 7)
        fan_in = cin * 25
        w = jax.random.normal(kw, (5, 5, cin, cout), jnp.float32) / jnp.sqrt(fan_in)
        b = 0.05 * jax.random.normal(kb, (cout,), jnp.float32)
        has_bn = li < 3
        if has_bn:
            gamma = 1.0 + 0.1 * jax.random.normal(kg, (cout,), jnp.float32)
            beta = 0.1 * jax.random.normal(kbe, (cout,), jnp.float32)
            mean = 0.1 * jax.random.normal(km, (cout,), jnp.float32)
            var = 1.0 + 0.1 * jnp.abs(jax.random.normal(kv, (cout,), jnp.float32))
            scale = gamma / jnp.sqrt(var + eps)
            shift = beta - mean * scale
        else:
            scale = jnp.ones((cout,), jnp.float32)
            shift = jnp.zeros((cout,), jnp.float32)
        convs.append(dict(w=w, b=b, scale=scale, shift=shift, relu=has_bn))
    return {"convs": convs}


# -----------------------------------------------------------------------------
# Pure-JAX reference (XLA convolutions) for a correctness check.
# -----------------------------------------------------------------------------
def _discriminator_ref(x_nchw, params):
    x = jnp.transpose(x_nchw, (0, 2, 3, 1)).astype(jnp.float32)
    for layer in params["convs"]:
        y = lax.conv_general_dilated(
            x, layer["w"], window_strides=(2, 2), padding=((1, 1), (1, 1)),
            dimension_numbers=("NHWC", "HWIO", "NHWC"))
        y = y + layer["b"][None, None, None, :]
        y = y * layer["scale"][None, None, None, :] + layer["shift"][None, None, None, :]
        if layer["relu"]:
            y = jnp.maximum(y, 0.0)
        x = y
    B, H, W, C = x.shape
    flat = jnp.transpose(x, (0, 3, 1, 2)).reshape(B, C * H * W)
    return flat[:, :100], jax.nn.sigmoid(flat[:, -1])


if __name__ == "__main__":
    key = jax.random.PRNGKey(0)
    kp, kx = jax.random.split(key)
    params = init_params(kp, ic=3)

    # Smallest spatial size that survives four stride-2, k=5, p=1 convs is 31;
    # 32x32 gives a (B, 101, 1, 1) feature map -> exactly 101 flat features.
    x = jax.random.normal(kx, (2, 3, 32, 32), dtype=jnp.float32)

    out_z, out_rf = discriminator_forward(x, params)
    out_z = jax.block_until_ready(out_z)
    out_rf = jax.block_until_ready(out_rf)

    ref_z, ref_rf = _discriminator_ref(x, params)
    assert out_z.shape == (2, 100) and out_rf.shape == (2,)
    assert jnp.allclose(out_z, ref_z, rtol=1e-4, atol=1e-4), \
        float(jnp.max(jnp.abs(out_z - ref_z)))
    assert jnp.allclose(out_rf, ref_rf, rtol=1e-4, atol=1e-4), \
        float(jnp.max(jnp.abs(out_rf - ref_rf)))

    print("KERNEL_OK")
</pallas_src>

<mosaic_0001>
module attributes {stable_mosaic.version = 11 : i64} {
  func.func @_conv_gemm_kernel(%arg0: i32, %arg1: memref<256x75xf32, #tpu.memory_space<vmem>>, %arg2: memref<75x32xf32, #tpu.memory_space<vmem>>, %arg3: memref<1x32xf32, #tpu.memory_space<vmem>>, %arg4: memref<1x32xf32, #tpu.memory_space<vmem>>, %arg5: memref<1x32xf32, #tpu.memory_space<vmem>>, %arg6: memref<256x32xf32, #tpu.memory_space<vmem>>) attributes {dimension_semantics = [#tpu.dimension_semantics<parallel>], iteration_bounds = array<i64: 2>, scalar_prefetch = 0 : i64, scratch_operands = 0 : i64, tpu.core_type = #tpu.core_type<tc>, window_params = [{transform_indices = @transform_0, window_bounds = array<i64: 256, 75>}, {pipeline_mode = #tpu.pipeline_mode<synchronous>, transform_indices = @transform_1, window_bounds = array<i64: 75, 32>}, {pipeline_mode = #tpu.pipeline_mode<synchronous>, transform_indices = @transform_2, window_bounds = array<i64: 1, 32>}, {pipeline_mode = #tpu.pipeline_mode<synchronous>, transform_indices = @transform_3, window_bounds = array<i64: 1, 32>}, {pipeline_mode = #tpu.pipeline_mode<synchronous>, transform_indices = @transform_4, window_bounds = array<i64: 1, 32>}, {transform_indices = @transform_5, window_bounds = array<i64: 256, 32>}]} {
    %c0 = arith.constant 0 : index
    %c0_0 = arith.constant 0 : index
    %0 = vector.load %arg1[%c0, %c0_0] : memref<256x75xf32, #tpu.memory_space<vmem>>, vector<256x75xf32>
    %c0_1 = arith.constant 0 : index
    %c0_2 = arith.constant 0 : index
    %1 = vector.load %arg2[%c0_1, %c0_2] : memref<75x32xf32, #tpu.memory_space<vmem>>, vector<75x32xf32>
    %cst = arith.constant dense<0.000000e+00> : vector<256x32xf32>
    %2 = tpu.matmul %0, %1, %cst {dimension_numbers = #tpu.dot_dimension_numbers<[1], [0], [0], [1], [0, 0, 1, 1], [], []>} : vector<256x75xf32>, vector<75x32xf32>, vector<256x32xf32> -> vector<256x32xf32>
    %c0_3 = arith.constant 0 : index
    %c0_4 = arith.constant 0 : index
    %3 = vector.load %arg3[%c0_3, %c0_4] : memref<1x32xf32, #tpu.memory_space<vmem>>, vector<1x32xf32>
    %4 = vector.broadcast %3 : vector<1x32xf32> to vector<256x32xf32>
    %5 = arith.addf %2, %4 : vector<256x32xf32>
    %c0_5 = arith.constant 0 : index
    %c0_6 = arith.constant 0 : index
    %6 = vector.load %arg4[%c0_5, %c0_6] : memref<1x32xf32, #tpu.memory_space<vmem>>, vector<1x32xf32>
    %7 = vector.broadcast %6 : vector<1x32xf32> to vector<256x32xf32>
    %8 = arith.mulf %5, %7 : vector<256x32xf32>
    %c0_7 = arith.constant 0 : index
    %c0_8 = arith.constant 0 : index
    %9 = vector.load %arg5[%c0_7, %c0_8] : memref<1x32xf32, #tpu.memory_space<vmem>>, vector<1x32xf32>
    %10 = vector.broadcast %9 : vector<1x32xf32> to vector<256x32xf32>
    %11 = arith.addf %8, %10 : vector<256x32xf32>
    %cst_9 = arith.constant 0.000000e+00 : f32
    %12 = vector.broadcast %cst_9 : f32 to vector<256x32xf32>
    %13 = arith.maximumf %11, %12 : vector<256x32xf32>
    %c0_10 = arith.constant 0 : index
    %c0_11 = arith.constant 0 : index
    %14 = vector.load %arg6[%c0_10, %c0_11] : memref<256x32xf32, #tpu.memory_space<vmem>>, vector<256x32xf32>
    tpu.vector_store %arg6[%c0_10, %c0_11], %13 {strides = array<i32>} : memref<256x32xf32, #tpu.memory_space<vmem>>, vector<256x32xf32>,
    return
  }
  func.func @transform_0(%arg0: i32) -> (i32, i32) {
    %c0_i32 = arith.constant 0 : i32
    %c0_i32_0 = arith.constant 0 : i32
    return %arg0, %c0_i32 : i32, i32
  }
  func.func @transform_1(%arg0: i32) -> (i32, i32) {
    %c0_i32 = arith.constant 0 : i32
    %c0_i32_0 = arith.constant 0 : i32
    %c0_i32_1 = arith.constant 0 : i32
    return %c0_i32, %c0_i32_0 : i32, i32
  }
  func.func @transform_2(%arg0: i32) -> (i32, i32) {
    %c0_i32 = arith.constant 0 : i32
    %c0_i32_0 = arith.constant 0 : i32
    %c0_i32_1 = arith.constant 0 : i32
    return %c0_i32, %c0_i32_0 : i32, i32
  }
  func.func @transform_3(%arg0: i32) -> (i32, i32) {
    %c0_i32 = arith.constant 0 : i32
    %c0_i32_0 = arith.constant 0 : i32
    %c0_i32_1 = arith.constant 0 : i32
    return %c0_i32, %c0_i32_0 : i32, i32
  }
  func.func @transform_4(%arg0: i32) -> (i32, i32) {
    %c0_i32 = arith.constant 0 : i32
    %c0_i32_0 = arith.constant 0 : i32
    %c0_i32_1 = arith.constant 0 : i32
    return %c0_i32, %c0_i32_0 : i32, i32
  }
  func.func @transform_5(%arg0: i32) -> (i32, i32) {
    %c0_i32 = arith.constant 0 : i32
    %c0_i32_0 = arith.constant 0 : i32
    return %arg0, %c0_i32 : i32, i32
  }
}

</mosaic_0001>

<llo_original>
// kernel: tpu_custom_call.1
$region0: #{tpu_custom_call.1}
  #allocation0 [shape = 'u32[]', space=smem, size = 0x4, offset = 0x4, fixed_abs, tag = 'smem constant byte address 0x4 - core index']
  #allocation1 [shape = 'u32[144,128]{1,0:T(1,128)}', space=vmem, size = 0x12000, scoped, tag = 'internal scratch']
  %s0 = inlined_call_operand.vmem [shape: f32[512,75], index: 0, kind: input, shape index: {}]
  %s1 = inlined_call_operand.vmem [shape: f32[75,32], index: 1, kind: input, shape index: {}]
  %s2 = inlined_call_operand.vmem [shape: f32[1,32], index: 2, kind: input, shape index: {}]
  %s3 = inlined_call_operand.vmem [shape: f32[1,32], index: 3, kind: input, shape index: {}]
  %s4 = inlined_call_operand.vmem [shape: f32[1,32], index: 4, kind: input, shape index: {}]
  %s5 = inlined_call_operand.vmem [shape: f32[512,32], index: 5, kind: output, shape index: {}]
  %s6 = sld [smem:[#allocation0]]
  $region53: #{tpu_custom_call.1} parent=0
    _
  %s8 = ssub.s32 1, %s6
  %s9 = scalar_select 0, %s8, %s6
  loop: start=0, step=1, limit=4
  $region2: #{tpu_custom_call.1} parent=0 // loop_pre_header
    _
  $region3: #{tpu_custom_call.1} parent=0 // loop_header
    %s11 = sphi 0, %s15
    %p12 = scmp.ge.s32.totalorder %s11, 4
    %s21 = sphi 0, %s23
    %s24 = sphi 0, %s21
    %s25 = sphi 0, %s24
    %s41 = sphi 0, %s25
    %s45 = sphi 0, %s45
    %s47 = sphi 0, %s45
    %s48 = sphi 0, %s47
    %s62 = sphi 0, %s48
    %s66 = sphi 0, %s66
    %s68 = sphi 0, %s66
    %s69 = sphi 0, %s68
    %s83 = sphi 0, %s69
    %s87 = sphi 0, %s87
    %s89 = sphi 0, %s87
    %s90 = sphi 0, %s89
    %s104 = sphi 0, %s90
    %s108 = sphi 0, %s108
    %s110 = sphi 0, %s108
    %s111 = sphi 0, %s110
    %s125 = sphi 0, %s111
    %s131 = sphi 0, %s133
    %s134 = sphi 0, %s131
    %s135 = sphi 0, %s134
    %s151 = sphi 0, %s135
  $region4: #{tpu_custom_call.1} parent=0 // loop_header_branch
    %14 = sbr.rel (%p12) target = $region8
  $region5: #{tpu_custom_call.1} parent=0 // loop_body
    %s16 = ssub.s32 %s11, 1
    %s17 = ssub.s32 %s11, 2
    %s18 = sadd.s32 %s11, 1
    %s19 = ssub.s32 %s11, %s18
    %p20 = scmp.eq.s32.totalorder %s19, 0
    %s22 = sadd.s32 %s21, 1
    %s23 = scalar_select %p20, %s21, %s22
    %p26 = pneg %p20
    %p27 = scmp.eq.s32.totalorder %s11, 1
    %p28 = por %p26, %p27
    %p29 = scmp.ne.s32.totalorder %s21, %s24
    %p30 = scmp.eq.s32.totalorder %s11, 0
    %p31 = por %p29, %p30
    %p32 = scmp.ne.s32.totalorder %s21, %s24
    %p33 = scmp.eq.s32.totalorder %s16, 1
    %p34 = por %p32, %p33
    %p35 = scmp.ne.s32.totalorder %s24, %s25
    %p36 = scmp.eq.s32.totalorder %s16, 0
    %p37 = por %p35, %p36
    %p38 = scmp.ne.s32.totalorder %s24, %s25
    %p39 = scmp.eq.s32.totalorder %s17, 1
    %p40 = por %p38, %p39
    %p42 = scmp.ne.s32.totalorder %s25, %s41
    %p43 = scmp.eq.s32.totalorder %s17, 0
    %p44 = por %p42, %p43
    %s46 = sadd.s32 %s45, 1
    %p49 = scmp.eq.s32.totalorder %s11, 1
    %p50 = scmp.ne.s32.totalorder %s45, %s47
    %p51 = scmp.eq.s32.totalorder %s11, 0
    %p52 = por %p50, %p51
    %p53 = scmp.ne.s32.totalorder %s45, %s47
    %p54 = scmp.eq.s32.totalorder %s16, 1
    %p55 = por %p53, %p54
    %p56 = scmp.ne.s32.totalorder %s47, %s48
    %p57 = scmp.eq.s32.totalorder %s16, 0
    %p58 = por %p56, %p57
    %p59 = scmp.ne.s32.totalorder %s47, %s48
    %p60 = scmp.eq.s32.totalorder %s17, 1
    %p61 = por %p59, %p60
    %p63 = scmp.ne.s32.totalorder %s48, %s62
    %p64 = scmp.eq.s32.totalorder %s17, 0
    %p65 = por %p63, %p64
    %s67 = sadd.s32 %s66, 1
    %p70 = scmp.eq.s32.totalorder %s11, 1
    %p71 = scmp.ne.s32.totalorder %s66, %s68
    %p72 = scmp.eq.s32.totalorder %s11, 0
    %p73 = por %p71, %p72
    %p74 = scmp.ne.s32.totalorder %s66, %s68
    %p75 = scmp.eq.s32.totalorder %s16, 1
    %p76 = por %p74, %p75
    %p77 = scmp.ne.s32.totalorder %s68, %s69
    %p78 = scmp.eq.s32.totalorder %s16, 0
    %p79 = por %p77, %p78
    %p80 = scmp.ne.s32.totalorder %s68, %s69
    %p81 = scmp.eq.s32.totalorder %s17, 1
    %p82 = por %p80, %p81
    %p84 = scmp.ne.s32.totalorder %s69, %s83
    %p85 = scmp.eq.s32.totalorder %s17, 0
    %p86 = por %p84, %p85
    %s88 = sadd.s32 %s87, 1
    %p91 = scmp.eq.s32.totalorder %s11, 1
    %p92 = scmp.ne.s32.totalorder %s87, %s89
    %p93 = scmp.eq.s32.totalorder %s11, 0
    %p94 = por %p92, %p93
    %p95 = scmp.ne.s32.totalorder %s87, %s89
    %p96 = scmp.eq.s32.totalorder %s16, 1
    %p97 = por %p95, %p96
    %p98 = scmp.ne.s32.totalorder %s89, %s90
    %p99 = scmp.eq.s32.totalorder %s16, 0
    %p100 = por %p98, %p99
    %p101 = scmp.ne.s32.totalorder %s89, %s90
    %p102 = scmp.eq.s32.totalorder %s17, 1
    %p103 = por %p101, %p102
    %p105 = scmp.ne.s32.totalorder %s90, %s104
    %p106 = scmp.eq.s32.totalorder %s17, 0
    %p107 = por %p105, %p106
    %s109 = sadd.s32 %s108, 1
    %p112 = scmp.eq.s32.totalorder %s11, 1
    %p113 = scmp.ne.s32.totalorder %s108, %s110
    %p114 = scmp.eq.s32.totalorder %s11, 0
    %p115 = por %p113, %p114
    %p116 = scmp.ne.s32.totalorder %s108, %s110
    %p117 = scmp.eq.s32.totalorder %s16, 1
    %p118 = por %p116, %p117
    %p119 = scmp.ne.s32.totalorder %s110, %s111
    %p120 = scmp.eq.s32.totalorder %s16, 0
    %p121 = por %p119, %p120
    %p122 = scmp.ne.s32.totalorder %s110, %s111
    %p123 = scmp.eq.s32.totalorder %s17, 1
    %p124 = por %p122, %p123
    %p126 = scmp.ne.s32.totalorder %s111, %s125
    %p127 = scmp.eq.s32.totalorder %s17, 0
    %p128 = por %p126, %p127
    %s129 = ssub.s32 %s11, %s18
    %p130 = scmp.eq.s32.totalorder %s129, 0
    %s132 = sadd.s32 %s131, 1
    %s133 = scalar_select %p130, %s131, %s132
    %p136 = pneg %p130
    %p137 = scmp.eq.s32.totalorder %s11, 1
    %p138 = por %p136, %p137
    %p139 = scmp.ne.s32.totalorder %s131, %s134
    %p140 = scmp.eq.s32.totalorder %s11, 0
    %p141 = por %p139, %p140
    %p142 = scmp.ne.s32.totalorder %s131, %s134
    %p143 = scmp.eq.s32.totalorder %s16, 1
    %p144 = por %p142, %p143
    %p145 = scmp.ne.s32.totalorder %s134, %s135
    %p146 = scmp.eq.s32.totalorder %s16, 0
    %p147 = por %p145, %p146
    %p148 = scmp.ne.s32.totalorder %s134, %s135
    %p149 = scmp.eq.s32.totalorder %s17, 1
    %p150 = por %p148, %p149
    %p152 = scmp.ne.s32.totalorder %s135, %s151
    %p153 = scmp.eq.s32.totalorder %s17, 0
    %p154 = por %p152, %p153
    %p155 = scmp.le.s32.totalorder 1, %s11
    %p156 = scmp.lt.s32.totalorder %s11, 3
    %p157 = pnand %p155, %p156
    %p158 = pneg %p157
    // Predicated region
    $region9: #{tpu_custom_call.1} parent=5 // pred_check
      _
    $region10: #{tpu_custom_call.1} parent=5 // pred_check_branch
      %160 = sbr.rel (%p157) target = $region12
    $region11: #{tpu_custom_call.1} parent=5 // pred_region
      %s161 = ssub.s32 %s11, 1
      // Predicated region
      $region13: #{tpu_custom_call.1} parent=11 // pred_check
        %p162 = pneg %p58
      $region14: #{tpu_custom_call.1} parent=11 // pred_check_branch
        %164 = sbr.rel (%p162) target = $region16
      $region15: #{tpu_custom_call.1} parent=11 // pred_region
        _
      $region16: #{tpu_custom_call.1} parent=11 // pred_fallthru
        _
      // Predicated region
      $region17: #{tpu_custom_call.1} parent=11 // pred_check
        %p165 = pneg %p79
      $region18: #{tpu_custom_call.1} parent=11 // pred_check_branch
        %167 = sbr.rel (%p165) target = $region20
      $region19: #{tpu_custom_call.1} parent=11 // pred_region
        _
      $region20: #{tpu_custom_call.1} parent=11 // pred_fallthru
        _
      // Predicated region
      $region21: #{tpu_custom_call.1} parent=11 // pred_check
        %p168 = pneg %p100
      $region22: #{tpu_custom_call.1} parent=11 // pred_check_branch
        %170 = sbr.rel (%p168) target = $region24
      $region23: #{tpu_custom_call.1} parent=11 // pred_region
        _
      $region24: #{tpu_custom_call.1} parent=11 // pred_fallthru
        _
      // Predicated region
      $region25: #{tpu_custom_call.1} parent=11 // pred_check
        %p171 = pneg %p121
      $region26: #{tpu_custom_call.1} parent=11 // pred_check_branch
        %173 = sbr.rel (%p171) target = $region28
      $region27: #{tpu_custom_call.1} parent=11 // pred_region
        _
      $region28: #{tpu_custom_call.1} parent=11 // pred_fallthru
        _
    $region12: #{tpu_custom_call.1} parent=5 // pred_fallthru
      _
    %p174 = scmp.lt.s32.totalorder %s11, 2
    // Predicated region
    $region29: #{tpu_custom_call.1} parent=5 // pred_check
      %p175 = pneg %p174
    $region30: #{tpu_custom_call.1} parent=5 // pred_check_branch
      %177 = sbr.rel (%p175) target = $region32
    $region31: #{tpu_custom_call.1} parent=5 // pred_region
      // Predicated region
      $region33: #{tpu_custom_call.1} parent=31 // pred_check
        %p178 = pneg %p31
      $region34: #{tpu_custom_call.1} parent=31 // pred_check_branch
        %180 = sbr.rel (%p178) target = $region36
      $region35: #{tpu_custom_call.1} parent=31 // pred_region
        %s181 = smul.u32 32, %s11
        %p182 = scmp.lt.s32.totalorder %s181, 63
        %s183 = scalar_select %p182, %s181, 63
        %s184 = smul.addr %s183, 8
        %s185 = scalar_lea.vmem %s0, %s184
        %s186 = smul.u32 32, %s11
      $region36: #{tpu_custom_call.1} parent=31 // pred_fallthru
        _
    $region32: #{tpu_custom_call.1} parent=5 // pred_fallthru
      _
    %p187 = scmp.le.s32.totalorder 1, %s11
    %p188 = scmp.lt.s32.totalorder %s11, 3
    %p189 = pnand %p187, %p188
    %p190 = pneg %p189
    // Predicated region
    $region37: #{tpu_custom_call.1} parent=5 // pred_check
      _
    $region38: #{tpu_custom_call.1} parent=5 // pred_check_branch
      %192 = sbr.rel (%p189) target = $region40
    $region39: #{tpu_custom_call.1} parent=5 // pred_region
      %s193 = ssub.s32 %s11, 1
      %s194 = smul.u32 32, %s16
      %p195 = scmp.lt.s32.totalorder %s194, 63
      %s196 = scalar_select %p195, %s194, 63
      %s197 = smul.addr %s196, 8
      %s198 = scalar_lea.vmem %s0, %s197
      %p199 = pneg %p37
      %p200 = pneg %p34
      %p201 = pneg %p58
      %p202 = pneg %p55
      %p203 = pneg %p79
      %p204 = pneg %p76
      %p205 = pneg %p100
      %p206 = pneg %p97
      %p207 = pneg %p121
      %p208 = pneg %p118
      %p209 = pneg %p147
      %p210 = pneg %p144
      %s211 = smul.u32 32, %s16
      %p212 = scmp.lt.s32.totalorder %s211, 63
      %s213 = scalar_select %p212, %s211, 63
      %s214 = smul.addr %s213, 8
      %s215 = scalar_lea.vmem %s5, %s214
      %s216 = smul.u32 32, %s16
      %p217 = scmp.lt.s32.totalorder %s216, 63
      %s218 = scalar_select %p217, %s216, 63
      %s219 = smul.addr %s218, 8
      %s220 = scalar_lea.vmem %s0, %s219
      %s221 = smul.u32 32, %s16
      %s222 = smul.u32 32, %s16
      %p223 = scmp.lt.s32.totalorder %s222, 63
      %s224 = scalar_select %p223, %s222, 63
      %s225 = smul.addr %s224, 8
      %s226 = scalar_lea.vmem %s5, %s225
      %s227 = smul.u32 32, %s16
      %v228 = vld [vmem:[%s220] sm:$0xff]
      %v229 = vld [vmem:[%s220 + $0x8] sm:$0xff]
      %v230 = vld [vmem:[%s220 + $0x10] sm:$0xff]
      %v231 = vld [vmem:[%s220 + $0x18] sm:$0xff]
      %v232 = vld [vmem:[%s220 + $0x20] sm:$0xff]
      %v233 = vld [vmem:[%s220 + $0x28] sm:$0xff]
      %v234 = vld [vmem:[%s220 + $0x30] sm:$0xff]
      %v235 = vld [vmem:[%s220 + $0x38] sm:$0xff]
      %v236 = vld [vmem:[%s220 + $0x40] sm:$0xff]
      %v237 = vld [vmem:[%s220 + $0x48] sm:$0xff]
      %v238 = vld [vmem:[%s220 + $0x50] sm:$0xff]
      %v239 = vld [vmem:[%s220 + $0x58] sm:$0xff]
      %v240 = vld [vmem:[%s220 + $0x60] sm:$0xff]
      %v241 = vld [vmem:[%s220 + $0x68] sm:$0xff]
      %v242 = vld [vmem:[%s220 + $0x70] sm:$0xff]
      %v243 = vld [vmem:[%s220 + $0x78] sm:$0xff]
      %v244 = vld [vmem:[%s220 + $0x80] sm:$0xff]
      %v245 = vld [vmem:[%s220 + $0x88] sm:$0xff]
      %v246 = vld [vmem:[%s220 + $0x90] sm:$0xff]
      %v247 = vld [vmem:[%s220 + $0x98] sm:$0xff]
      %v248 = vld [vmem:[%s220 + $0xa0] sm:$0xff]
      %v249 = vld [vmem:[%s220 + $0xa8] sm:$0xff]
      %v250 = vld [vmem:[%s220 + $0xb0] sm:$0xff]
      %v251 = vld [vmem:[%s220 + $0xb8] sm:$0xff]
      %v252 = vld [vmem:[%s220 + $0xc0] sm:$0xff]
      %v253 = vld [vmem:[%s220 + $0xc8] sm:$0xff]
      %v254 = vld [vmem:[%s220 + $0xd0] sm:$0xff]
      %v255 = vld [vmem:[%s220 + $0xd8] sm:$0xff]
      %v256 = vld [vmem:[%s220 + $0xe0] sm:$0xff]
      %v257 = vld [vmem:[%s220 + $0xe8] sm:$0xff]
      %v258 = vld [vmem:[%s220 + $0xf0] sm:$0xff]
      %v259 = vld [vmem:[%s220 + $0xf8] sm:$0xff]
      %v260 = vld [vmem:[%s1] sm:$0xff]
      %v261 = vld [vmem:[%s1 + $0x8] sm:$0xff]
      %v262 = vld [vmem:[%s1 + $0x10] sm:$0xff]
      %v263 = vld [vmem:[%s1 + $0x18] sm:$0xff]
      %v264 = vld [vmem:[%s1 + $0x20] sm:$0xff]
      %v265 = vld [vmem:[%s1 + $0x28] sm:$0xff]
      %v266 = vld [vmem:[%s1 + $0x30] sm:$0xff]
      %v267 = vld [vmem:[%s1 + $0x38] sm:$0xff]
      %v268 = vld [vmem:[%s1 + $0x40] sm:$0xff]
      %v269 = vld [vmem:[%s1 + $0x48] sm:$0x7]
      %v270 = vld [vmem:[%s2] sm:$0x1]
      %v272 = vlaneseq
      %v273 = vshrl.u32 %v272, 7
      %v274 = vsub.s32 0, %v273
      %v275 = vrot.slane %v270, %v274
      %vm277 = vcmask 613376
      %v279 = vsel %vm277, %v228, 0
      %v282 = vsel %vm277, %v229, 0
      %v285 = vsel %vm277, %v230, 0
      %v288 = vsel %vm277, %v231, 0
      %v291 = vsel %vm277, %v232, 0
      %v294 = vsel %vm277, %v233, 0
      %v297 = vsel %vm277, %v234, 0
      %v300 = vsel %vm277, %v235, 0
      %v303 = vsel %vm277, %v236, 0
      %v306 = vsel %vm277, %v237, 0
      %v309 = vsel %vm277, %v238, 0
      %v312 = vsel %vm277, %v239, 0
      %v315 = vsel %vm277, %v240, 0
      %v318 = vsel %vm277, %v241, 0
      %v321 = vsel %vm277, %v242, 0
      %v324 = vsel %vm277, %v243, 0
      %v327 = vsel %vm277, %v244, 0
      %v330 = vsel %vm277, %v245, 0
      %v333 = vsel %vm277, %v246, 0
      %v336 = vsel %vm277, %v247, 0
      %v339 = vsel %vm277, %v248, 0
      %v342 = vsel %vm277, %v249, 0
      %v345 = vsel %vm277, %v250, 0
      %v348 = vsel %vm277, %v251, 0
      %v351 = vsel %vm277, %v252, 0
      %v354 = vsel %vm277, %v253, 0
      %v357 = vsel %vm277, %v254, 0
      %v360 = vsel %vm277, %v255, 0
      %v363 = vsel %vm277, %v256, 0
      %v366 = vsel %vm277, %v257, 0
      %v369 = vsel %vm277, %v258, 0
      %v372 = vsel %vm277, %v259, 0
      %vm374 = vcmask 1042432
      %v376 = vsel %vm374, %v269, 0
      %378 = vmatprep.subr.mxu0 0.0
      %379 = vmatpush1.msra.mxu0 0.0
      %380 = vmatprep.subr.mxu0 0.0
      %381 = vmatpush1.msra.mxu0 0.0
      %382 = vmatprep.subr.mxu0 0.0
      %383 = vmatpush1.msra.mxu0 0.0
      %384 = vmatprep.subr.mxu0 0.0
      %385 = vmatpush1.msra.mxu0 0.0
      %386 = vmatprep.subr.mxu0 0.0
      %387 = vmatpush1.msra.mxu0 0.0
      %388 = vmatprep.subr.mxu0 0.0
      %389 = vmatpush1.msra.mxu0 0.0
      %390 = vmatprep.subr.mxu0 0.0
      %391 = vmatpush1.msra.mxu0 %v376
      %392 = vmatprep.subr.mxu0 0.0
      %393 = vmatpush1.msra.mxu0 %v268
      %394 = vmatprep.subr.mxu0 0.0
      %395 = vmatpush1.msra.mxu0 %v267
      %396 = vmatprep.subr.mxu0 0.0
      %397 = vmatpush1.msra.mxu0 %v266
      %398 = vmatprep.subr.mxu0 0.0
      %399 = vmatpush1.msra.mxu0 %v265
      %400 = vmatprep.subr.mxu0 0.0
      %401 = vmatpush1.msra.mxu0 %v264
      %402 = vmatprep.subr.mxu0 0.0
      %403 = vmatpush1.msra.mxu0 %v263
      %404 = vmatprep.subr.mxu0 0.0
      %405 = vmatpush1.msra.mxu0 %v262
      %406 = vmatprep.subr.mxu0 0.0
      %407 = vmatpush1.msra.mxu0 %v261
      %408 = vmatprep.subr.mxu0 0.0
      %409 = vmatpush1.msra.mxu0 %v260
      %410 = vmatprep.subr.mxu0 0.0
      %411 = vmatpush2.msra.mxu0 0.0
      %412 = vmatprep.subr.mxu0 0.0
      %413 = vmatpush2.msra.mxu0 0.0
      %414 = vmatprep.subr.mxu0 0.0
      %415 = vmatpush2.msra.mxu0 0.0
      %416 = vmatprep.subr.mxu0 0.0
      %417 = vmatpush2.msra.mxu0 0.0
      %418 = vmatprep.subr.mxu0 0.0
      %419 = vmatpush2.msra.mxu0 0.0
      %420 = vmatprep.subr.mxu0 0.0
      %421 = vmatpush2.msra.mxu0 0.0
      %422 = vmatprep.subr.mxu0 0.0
      %423 = vmatpush2.msra.mxu0 0.0
      %424 = vmatprep.subr.mxu0 0.0
      %425 = vmatpush2.msra.mxu0 0.0
      %426 = vmatprep.subr.mxu0 0.0
      %427 = vmatpush2.msra.mxu0 0.0
      %428 = vmatprep.subr.mxu0 0.0
      %429 = vmatpush2.msra.mxu0 0.0
      %430 = vmatprep.subr.mxu0 0.0
      %431 = vmatpush2.msra.mxu0 0.0
      %432 = vmatprep.subr.mxu0 0.0
      %433 = vmatpush2.msra.mxu0 0.0
      %434 = vmatprep.subr.mxu0 0.0
      %435 = vmatpush2.msra.mxu0 0.0
      %436 = vmatprep.subr.mxu0 0.0
      %437 = vmatpush2.msra.mxu0 0.0
      %438 = vmatprep.subr.mxu0 0.0
      %439 = vmatpush2.msra.mxu0 0.0
      %440 = vmatprep.subr.mxu0 0.0
      %441 = vmatpush2.msra.mxu0 0.0
      %442 = vmatprep.mubr.f32.mxu0 0.0
      %443 = vmatmul.mubr.f32.gmra.mxu0 %v279
      %v444 = vpop.f32.mrf.mxu0
      %v445 = vadd.f32 %v275, %v444
      %v446 = vpop.f32.mrf.mxu0
      %447 = vmatprep.mubr.f32.mxu0 0.0
      %448 = vmatmul.mubr.f32.gmra.mxu0 %v282
      %v449 = vpop.f32.mrf.mxu0
      %v450 = vadd.f32 %v275, %v449
      %v451 = vpop.f32.mrf.mxu0
      %452 = vmatprep.mubr.f32.mxu0 0.0
      %453 = vmatmul.mubr.f32.gmra.mxu0 %v285
      %v454 = vpop.f32.mrf.mxu0
      %v455 = vadd.f32 %v275, %v454
      %v456 = vpop.f32.mrf.mxu0
      %457 = vmatprep.mubr.f32.mxu0 0.0
      %458 = vmatmul.mubr.f32.gmra.mxu0 %v288
      %v459 = vpop.f32.mrf.mxu0
      %v460 = vadd.f32 %v275, %v459
      %v461 = vpop.f32.mrf.mxu0
      %462 = vmatprep.mubr.f32.mxu0 0.0
      %463 = vmatmul.mubr.f32.gmra.mxu0 %v291
      %v464 = vpop.f32.mrf.mxu0
      %v465 = vadd.f32 %v275, %v464
      %v466 = vpop.f32.mrf.mxu0
      %467 = vmatprep.mubr.f32.mxu0 0.0
      %468 = vmatmul.mubr.f32.gmra.mxu0 %v294
      %v469 = vpop.f32.mrf.mxu0
      %v470 = vadd.f32 %v275, %v469
      %v471 = vpop.f32.mrf.mxu0
      %472 = vmatprep.mubr.f32.mxu0 0.0
      %473 = vmatmul.mubr.f32.gmra.mxu0 %v297
      %v474 = vpop.f32.mrf.mxu0
      %v475 = vadd.f32 %v275, %v474
      %v476 = vpop.f32.mrf.mxu0
      %477 = vmatprep.mubr.f32.mxu0 0.0
      %478 = vmatmul.mubr.f32.gmra.mxu0 %v300
      %v479 = vpop.f32.mrf.mxu0
      %v480 = vadd.f32 %v275, %v479
      %v481 = vpop.f32.mrf.mxu0
      %482 = vmatprep.mubr.f32.mxu0 0.0
      %483 = vmatmul.mubr.f32.gmra.mxu0 %v303
      %v484 = vpop.f32.mrf.mxu0
      %v485 = vadd.f32 %v275, %v484
      %v486 = vpop.f32.mrf.mxu0
      %487 = vmatprep.mubr.f32.mxu0 0.0
      %488 = vmatmul.mubr.f32.gmra.mxu0 %v306
      %v489 = vpop.f32.mrf.mxu0
      %v490 = vadd.f32 %v275, %v489
      %v491 = vpop.f32.mrf.mxu0
      %492 = vmatprep.mubr.f32.mxu0 0.0
      %493 = vmatmul.mubr.f32.gmra.mxu0 %v309
      %v494 = vpop.f32.mrf.mxu0
      %v495 = vadd.f32 %v275, %v494
      %v496 = vpop.f32.mrf.mxu0
      %497 = vmatprep.mubr.f32.mxu0 0.0
      %498 = vmatmul.mubr.f32.gmra.mxu0 %v312
      %v499 = vpop.f32.mrf.mxu0
      %v500 = vadd.f32 %v275, %v499
      %v501 = vpop.f32.mrf.mxu0
      %502 = vmatprep.mubr.f32.mxu0 0.0
      %503 = vmatmul.mubr.f32.gmra.mxu0 %v315
      %v504 = vpop.f32.mrf.mxu0
      %v505 = vadd.f32 %v275, %v504
      %v506 = vpop.f32.mrf.mxu0
      %507 = vmatprep.mubr.f32.mxu0 0.0
      %508 = vmatmul.mubr.f32.gmra.mxu0 %v318
      %v509 = vpop.f32.mrf.mxu0
      %v510 = vadd.f32 %v275, %v509
      %v511 = vpop.f32.mrf.mxu0
      %512 = vmatprep.mubr.f32.mxu0 0.0
      %513 = vmatmul.mubr.f32.gmra.mxu0 %v321
      %v514 = vpop.f32.mrf.mxu0
      %v515 = vadd.f32 %v275, %v514
      %v516 = vpop.f32.mrf.mxu0
      %517 = vmatprep.mubr.f32.mxu0 0.0
      %518 = vmatmul.mubr.f32.gmra.mxu0 %v324
      %v519 = vpop.f32.mrf.mxu0
      %v520 = vadd.f32 %v275, %v519
      %v521 = vpop.f32.mrf.mxu0
      %522 = vmatprep.mubr.f32.mxu0 0.0
      %523 = vmatmul.mubr.f32.gmra.mxu0 %v327
      %v524 = vpop.f32.mrf.mxu0
      %v525 = vadd.f32 %v275, %v524
      %v526 = vpop.f32.mrf.mxu0
      %527 = vmatprep.mubr.f32.mxu0 0.0
      %528 = vmatmul.mubr.f32.gmra.mxu0 %v330
      %v529 = vpop.f32.mrf.mxu0
      %v530 = vadd.f32 %v275, %v529
      %v531 = vpop.f32.mrf.mxu0
      %532 = vmatprep.mubr.f32.mxu0 0.0
      %533 = vmatmul.mubr.f32.gmra.mxu0 %v333
      %v534 = vpop.f32.mrf.mxu0
      %v535 = vadd.f32 %v275, %v534
      %v536 = vpop.f32.mrf.mxu0
      %537 = vmatprep.mubr.f32.mxu0 0.0
      %538 = vmatmul.mubr.f32.gmra.mxu0 %v336
      %v539 = vpop.f32.mrf.mxu0
      %v540 = vadd.f32 %v275, %v539
      %v541 = vpop.f32.mrf.mxu0
      %542 = vmatprep.mubr.f32.mxu0 0.0
      %543 = vmatmul.mubr.f32.gmra.mxu0 %v339
      %v544 = vpop.f32.mrf.mxu0
      %v545 = vadd.f32 %v275, %v544
      %v546 = vpop.f32.mrf.mxu0
      %547 = vmatprep.mubr.f32.mxu0 0.0
      %548 = vmatmul.mubr.f32.gmra.mxu0 %v342
      %v549 = vpop.f32.mrf.mxu0
      %v550 = vadd.f32 %v275, %v549
      %v551 = vpop.f32.mrf.mxu0
      %552 = vmatprep.mubr.f32.mxu0 0.0
      %553 = vmatmul.mubr.f32.gmra.mxu0 %v345
      %v554 = vpop.f32.mrf.mxu0
      %v555 = vadd.f32 %v275, %v554
      %v556 = vpop.f32.mrf.mxu0
      %557 = vmatprep.mubr.f32.mxu0 0.0
      %558 = vmatmul.mubr.f32.gmra.mxu0 %v348
      %v559 = vpop.f32.mrf.mxu0
      %v560 = vadd.f32 %v275, %v559
      %v561 = vpop.f32.mrf.mxu0
      %562 = vmatprep.mubr.f32.mxu0 0.0
      %563 = vmatmul.mubr.f32.gmra.mxu0 %v351
      %v564 = vpop.f32.mrf.mxu0
      %v565 = vadd.f32 %v275, %v564
      %v566 = vpop.f32.mrf.mxu0
      %567 = vmatprep.mubr.f32.mxu0 0.0
      %568 = vmatmul.mubr.f32.gmra.mxu0 %v354
      %v569 = vpop.f32.mrf.mxu0
      %v570 = vadd.f32 %v275, %v569
      %v571 = vpop.f32.mrf.mxu0
      %572 = vmatprep.mubr.f32.mxu0 0.0
      %573 = vmatmul.mubr.f32.gmra.mxu0 %v357
      %v574 = vpop.f32.mrf.mxu0
      %v575 = vadd.f32 %v275, %v574
      %v576 = vpop.f32.mrf.mxu0
      %577 = vmatprep.mubr.f32.mxu0 0.0
      %578 = vmatmul.mubr.f32.gmra.mxu0 %v360
      %v579 = vpop.f32.mrf.mxu0
      %v580 = vadd.f32 %v275, %v579
      %v581 = vpop.f32.mrf.mxu0
      %582 = vmatprep.mubr.f32.mxu0 0.0
      %583 = vmatmul.mubr.f32.gmra.mxu0 %v363
      %v584 = vpop.f32.mrf.mxu0
      %v585 = vadd.f32 %v275, %v584
      %v586 = vpop.f32.mrf.mxu0
      %587 = vmatprep.mubr.f32.mxu0 0.0
      %588 = vmatmul.mubr.f32.gmra.mxu0 %v366
      %v589 = vpop.f32.mrf.mxu0
      %v590 = vadd.f32 %v275, %v589
      %v591 = vpop.f32.mrf.mxu0
      %592 = vmatprep.mubr.f32.mxu0 0.0
      %593 = vmatmul.mubr.f32.gmra.mxu0 %v369
      %v594 = vpop.f32.mrf.mxu0
      %v595 = vadd.f32 %v275, %v594
      %v596 = vpop.f32.mrf.mxu0
      %597 = vmatprep.mubr.f32.mxu0 0.0
      %598 = vmatmul.mubr.f32.gmra.mxu0 %v372
      %v599 = vpop.f32.mrf.mxu0
      %v600 = vadd.f32 %v275, %v599
      %v601 = vpop.f32.mrf.mxu0
      %602 = vdwg.mxu0
      %v603 = vld [vmem:[%s3] sm:$0x1]
      %v605 = vlaneseq
      %v606 = vshrl.u32 %v605, 7
      %v607 = vsub.s32 0, %v606
      %v608 = vrot.slane %v603, %v607
      %v610 = vmul.f32 %v445, %v608
      %v611 = vmul.f32 %v450, %v608
      %v612 = vmul.f32 %v455, %v608
      %v613 = vmul.f32 %v460, %v608
      %v614 = vmul.f32 %v465, %v608
      %v615 = vmul.f32 %v470, %v608
      %v616 = vmul.f32 %v475, %v608
      %v617 = vmul.f32 %v480, %v608
      %v618 = vmul.f32 %v485, %v608
      %v619 = vmul.f32 %v490, %v608
      %v620 = vmul.f32 %v495, %v608
      %v621 = vmul.f32 %v500, %v608
      %v622 = vmul.f32 %v505, %v608
      %v623 = vmul.f32 %v510, %v608
      %v624 = vmul.f32 %v515, %v608
      %v625 = vmul.f32 %v520, %v608
      %v626 = vmul.f32 %v525, %v608
      %v627 = vmul.f32 %v530, %v608
      %v628 = vmul.f32 %v535, %v608
      %v629 = vmul.f32 %v540, %v608
      %v630 = vmul.f32 %v545, %v608
      %v631 = vmul.f32 %v550, %v608
      %v632 = vmul.f32 %v555, %v608
      %v633 = vmul.f32 %v560, %v608
      %v634 = vmul.f32 %v565, %v608
      %v635 = vmul.f32 %v570, %v608
      %v636 = vmul.f32 %v575, %v608
      %v637 = vmul.f32 %v580, %v608
      %v638 = vmul.f32 %v585, %v608
      %v639 = vmul.f32 %v590, %v608
      %v640 = vmul.f32 %v595, %v608
      %v641 = vmul.f32 %v600, %v608
      %v642 = vld [vmem:[%s4] sm:$0x1]
      %v644 = vlaneseq
      %v645 = vshrl.u32 %v644, 7
      %v646 = vsub.s32 0, %v645
      %v647 = vrot.slane %v642, %v646
      %v649 = vadd.f32 %v610, %v647
      %v650 = vadd.f32 %v611, %v647
      %v651 = vadd.f32 %v612, %v647
      %v652 = vadd.f32 %v613, %v647
      %v653 = vadd.f32 %v614, %v647
      %v654 = vadd.f32 %v615, %v647
      %v655 = vadd.f32 %v616, %v647
      %v656 = vadd.f32 %v617, %v647
      %v657 = vadd.f32 %v618, %v647
      %v658 = vadd.f32 %v619, %v647
      %v659 = vadd.f32 %v620, %v647
      %v660 = vadd.f32 %v621, %v647
      %v661 = vadd.f32 %v622, %v647
      %v662 = vadd.f32 %v623, %v647
      %v663 = vadd.f32 %v624, %v647
      %v664 = vadd.f32 %v625, %v647
      %v665 = vadd.f32 %v626, %v647
      %v666 = vadd.f32 %v627, %v647
      %v667 = vadd.f32 %v628, %v647
      %v668 = vadd.f32 %v629, %v647
      %v669 = vadd.f32 %v630, %v647
      %v670 = vadd.f32 %v631, %v647
      %v671 = vadd.f32 %v632, %v647
      %v672 = vadd.f32 %v633, %v647
      %v673 = vadd.f32 %v634, %v647
      %v674 = vadd.f32 %v635, %v647
      %v675 = vadd.f32 %v636, %v647
      %v676 = vadd.f32 %v637, %v647
      %v677 = vadd.f32 %v638, %v647
      %v678 = vadd.f32 %v639, %v647
      %v679 = vadd.f32 %v640, %v647
      %v680 = vadd.f32 %v641, %v647
      %v681 = vmax.f32 %v649, 0.0
      %v682 = vmax.f32 %v650, 0.0
      %v683 = vmax.f32 %v651, 0.0
      %v684 = vmax.f32 %v652, 0.0
      %v685 = vmax.f32 %v653, 0.0
      %v686 = vmax.f32 %v654, 0.0
      %v687 = vmax.f32 %v655, 0.0
      %v688 = vmax.f32 %v656, 0.0
      %v689 = vmax.f32 %v657, 0.0
      %v690 = vmax.f32 %v658, 0.0
      %v691 = vmax.f32 %v659, 0.0
      %v692 = vmax.f32 %v660, 0.0
      %v693 = vmax.f32 %v661, 0.0
      %v694 = vmax.f32 %v662, 0.0
      %v695 = vmax.f32 %v663, 0.0
      %v696 = vmax.f32 %v664, 0.0
      %v697 = vmax.f32 %v665, 0.0
      %v698 = vmax.f32 %v666, 0.0
      %v699 = vmax.f32 %v667, 0.0
      %v700 = vmax.f32 %v668, 0.0
      %v701 = vmax.f32 %v669, 0.0
      %v702 = vmax.f32 %v670, 0.0
      %v703 = vmax.f32 %v671, 0.0
      %v704 = vmax.f32 %v672, 0.0
      %v705 = vmax.f32 %v673, 0.0
      %v706 = vmax.f32 %v674, 0.0
      %v707 = vmax.f32 %v675, 0.0
      %v708 = vmax.f32 %v676, 0.0
      %v709 = vmax.f32 %v677, 0.0
      %v710 = vmax.f32 %v678, 0.0
      %v711 = vmax.f32 %v679, 0.0
      %v712 = vmax.f32 %v680, 0.0
      %vm713 = vcmask 261120
      %714 = vst.msk [vmem:[%s226] sm:$0xff] %vm713, %v681
      %715 = vst.msk [vmem:[%s226 + $0x8] sm:$0xff] %vm713, %v682
      %716 = vst.msk [vmem:[%s226 + $0x10] sm:$0xff] %vm713, %v683
      %717 = vst.msk [vmem:[%s226 + $0x18] sm:$0xff] %vm713, %v684
      %718 = vst.msk [vmem:[%s226 + $0x20] sm:$0xff] %vm713, %v685
      %719 = vst.msk [vmem:[%s226 + $0x28] sm:$0xff] %vm713, %v686
      %720 = vst.msk [vmem:[%s226 + $0x30] sm:$0xff] %vm713, %v687
      %721 = vst.msk [vmem:[%s226 + $0x38] sm:$0xff] %vm713, %v688
      %722 = vst.msk [vmem:[%s226 + $0x40] sm:$0xff] %vm713, %v689
      %723 = vst.msk [vmem:[%s226 + $0x48] sm:$0xff] %vm713, %v690
      %724 = vst.msk [vmem:[%s226 + $0x50] sm:$0xff] %vm713, %v691
      %725 = vst.msk [vmem:[%s226 + $0x58] sm:$0xff] %vm713, %v692
      %726 = vst.msk [vmem:[%s226 + $0x60] sm:$0xff] %vm713, %v693
      %727 = vst.msk [vmem:[%s226 + $0x68] sm:$0xff] %vm713, %v694
      %728 = vst.msk [vmem:[%s226 + $0x70] sm:$0xff] %vm713, %v695
      %729 = vst.msk [vmem:[%s226 + $0x78] sm:$0xff] %vm713, %v696
      %730 = vst.msk [vmem:[%s226 + $0x80] sm:$0xff] %vm713, %v697
      %731 = vst.msk [vmem:[%s226 + $0x88] sm:$0xff] %vm713, %v698
      %732 = vst.msk [vmem:[%s226 + $0x90] sm:$0xff] %vm713, %v699
      %733 = vst.msk [vmem:[%s226 + $0x98] sm:$0xff] %vm713, %v700
      %734 = vst.msk [vmem:[%s226 + $0xa0] sm:$0xff] %vm713, %v701
      %735 = vst.msk [vmem:[%s226 + $0xa8] sm:$0xff] %vm713, %v702
      %736 = vst.msk [vmem:[%s226 + $0xb0] sm:$0xff] %vm713, %v703
      %737 = vst.msk [vmem:[%s226 + $0xb8] sm:$0xff] %vm713, %v704
      %738 = vst.msk [vmem:[%s226 + $0xc0] sm:$0xff] %vm713, %v705
      %739 = vst.msk [vmem:[%s226 + $0xc8] sm:$0xff] %vm713, %v706
      %740 = vst.msk [vmem:[%s226 + $0xd0] sm:$0xff] %vm713, %v707
      %741 = vst.msk [vmem:[%s226 + $0xd8] sm:$0xff] %vm713, %v708
      %742 = vst.msk [vmem:[%s226 + $0xe0] sm:$0xff] %vm713, %v709
      %743 = vst.msk [vmem:[%s226 + $0xe8] sm:$0xff] %vm713, %v710
      %744 = vst.msk [vmem:[%s226 + $0xf0] sm:$0xff] %vm713, %v711
      %745 = vst.msk [vmem:[%s226 + $0xf8] sm:$0xff] %vm713, %v712
      %s746 = smul.u32 32, %s16
      %p747 = scmp.lt.s32.totalorder %s746, 63
      %s748 = scalar_select %p747, %s746, 63
      %s749 = smul.addr %s748, 8
      %s750 = scalar_lea.vmem %s5, %s749
      // Predicated region
      $region41: #{tpu_custom_call.1} parent=39 // pred_check
        %p751 = pneg %p144
      $region42: #{tpu_custom_call.1} parent=39 // pred_check_branch
        %753 = sbr.rel (%p751) target = $region44
      $region43: #{tpu_custom_call.1} parent=39 // pred_region
        %s754 = smul.u32 32, %s16
      $region44: #{tpu_custom_call.1} parent=39 // pred_fallthru
        _
    $region40: #{tpu_custom_call.1} parent=5 // pred_fallthru
      _
    %p755 = scmp.le.s32.totalorder 2, %s11
    // Predicated region
    $region45: #{tpu_custom_call.1} parent=5 // pred_check
      %p756 = pneg %p755
    $region46: #{tpu_custom_call.1} parent=5 // pred_check_branch
      %758 = sbr.rel (%p756) target = $region48
    $region47: #{tpu_custom_call.1} parent=5 // pred_region
      %s759 = ssub.s32 %s11, 2
      // Predicated region
      $region49: #{tpu_custom_call.1} parent=47 // pred_check
        %p760 = pneg %p150
      $region50: #{tpu_custom_call.1} parent=47 // pred_check_branch
        %762 = sbr.rel (%p760) target = $region52
      $region51: #{tpu_custom_call.1} parent=47 // pred_region
        %s763 = smul.u32 32, %s17
        %p764 = scmp.lt.s32.totalorder %s763, 63
        %s765 = scalar_select %p764, %s763, 63
        %s766 = smul.addr %s765, 8
        %s767 = scalar_lea.vmem %s5, %s766
      $region52: #{tpu_custom_call.1} parent=47 // pred_fallthru
        _
    $region48: #{tpu_custom_call.1} parent=5 // pred_fallthru
      _
  $region6: #{tpu_custom_call.1} parent=0 // loop_footer
    %s15 = sadd.s32 1, %s11
  $region7: #{tpu_custom_call.1} parent=0 // loop_footer_branch
    %10 = sbr.rel target = $region3
  $region8: #{tpu_custom_call.1} parent=0 // loop_exit
    _

</llo_original>
